<compile_context>
chip_gen: v7x
topology: tpu7x:2x2x1
jax: 0.10.0
libtpu: 0.0.40
codegen_flags: <defaults>
</compile_context>

<pallas_src>
import functools

import jax
import jax.numpy as jnp
from jax.experimental import pallas as pl
from jax.experimental.pallas import tpu as pltpu


def _layernorm_kernel(x_ref, g_ref, b_ref, o_ref, *, eps, inv_n, inv_nm1,
                      n_over_nm1):
    # x_ref: (TN, F) tile; per-row reduction over the lane axis (F).
    x = x_ref[...].astype(jnp.float32)
    # One-pass statistics: a single traversal, both reductions overlap.
    s1 = jnp.sum(x, axis=1, keepdims=True)
    s2 = jnp.sum(x * x, axis=1, keepdims=True)
    mean = s1 * jnp.float32(inv_n)
    # Unbiased (ddof=1) variance, matching torch.std's default.  The one-pass
    # form can cancel if |mean| >> spread; clamp at 0 so sqrt never sees a
    # tiny negative from f32 rounding.
    var = s2 * jnp.float32(inv_nm1) - jnp.float32(n_over_nm1) * (mean * mean)
    var = jnp.maximum(var, jnp.float32(0.0))
    std = jnp.sqrt(var)
    # eps is added to std (NOT inside the sqrt) per the module.  Exact EUP
    # reciprocal; approx=True would eat into the 1e-5 tolerance.
    inv = pl.reciprocal(std + jnp.float32(eps), approx=False)
    # Single fused f32 expression, one final cast (bf16-safe on v5e).
    o_ref[...] = ((x - mean) * inv * g_ref[...] + b_ref[...]).astype(o_ref.dtype)


def _pick_row_tile(n_rows, n_feat, itemsize):
    """Rows per block.  Priorities:
      1. legality: multiple of the dtype sublane quantum, or the full row count
      2. VMEM: true f32 working set (not just input itemsize) under ~40 MiB so
         it also fits v7x's 64 MiB with compiler-scratch headroom
      3. pipelining: ~4-8 grid steps when the batch allows (DMA/compute
         overlap; lets dimension_semantics=('parallel',) use both v7x TCs)
      4. ...but never below ~1 MiB input tiles just to manufacture steps
         (mem-bound v5e/v6e floor; per-step overhead ~0.35 us).
    """
    sublane = {4: 8, 2: 16, 1: 32}.get(itemsize, 8)
    if n_rows <= sublane:
        return n_rows                        # full dim is the only legal block

    def rnd(r):                              # round down to sublane multiple
        return max(sublane, (int(r) // sublane) * sublane)

    feat_bytes = max(1, n_feat * itemsize)
    # 2x in + 2x out double buffers + ~3 f32 temporaries, per tile row.
    per_row_bytes = max(1, n_feat * (4 * itemsize + 3 * 4))
    rows_budget = rnd((40 << 20) // per_row_bytes)    # v7x-safe VMEM budget
    rows_sweet = rnd((4 << 20) // feat_bytes)         # 2-8 MiB HBM sweet spot
    rows = min(rows_budget, rows_sweet)

    want_steps = min(8, n_rows // sublane)
    if want_steps >= 2:
        rows_steps = rnd(pl.cdiv(n_rows, want_steps))  # cap for grid depth
        rows_1mib = rnd(pl.cdiv(1 << 20, feat_bytes))  # 1 MiB tile floor
        rows = min(rows, max(rows_steps, min(rows_1mib, rows_budget)))

    if rows >= n_rows:
        return n_rows
    return rows
    # TODO(synk): for very large F (a single sublane-quantum row tile already
    # blows the ~40 MiB budget; threshold ~2x lower on v7x) add a second
    # "arbitrary" grid axis over F-chunks with pl.when-initialized partial
    # sum/sumsq accumulators and a finalize step.


def flatten_affine(gamma, beta, spatial):
    """Pre-broadcast per-channel affine to the flattened (1, C*spatial) layout.
    Call ONCE per parameter update, not per forward pass (avoids re-writing
    2*F*4 bytes of HBM on every call)."""
    c = gamma.shape[0]
    g = jnp.broadcast_to(gamma.astype(jnp.float32)[:, None], (c, spatial))
    b = jnp.broadcast_to(beta.astype(jnp.float32)[:, None], (c, spatial))
    return g.reshape(1, c * spatial), b.reshape(1, c * spatial)


@functools.partial(jax.jit, static_argnames=("eps",))
def layer_norm(x, g_flat, b_flat, eps=1e-5):
    """x: (N, C, H, W); g_flat/b_flat: (1, C*H*W) from flatten_affine()."""
    N, C, H, W = x.shape
    F = C * H * W
    x_flat = x.reshape(N, F)

    itemsize = jnp.dtype(x.dtype).itemsize
    tn = _pick_row_tile(N, F, itemsize)
    grid = (pl.cdiv(N, tn),)

    # VMEM: double-buffered in/out tiles + in-kernel f32 temps + resident g/b.
    est = 4 * tn * F * itemsize + 3 * tn * F * 4 + 2 * F * 4
    vmem_limit = max(32 << 20, min(50 << 20, int(1.3 * est)))  # v7x-safe cap
    if est > vmem_limit:
        # Degenerate huge-F tile; really needs the F-axis split (TODO above).
        vmem_limit = min(100 << 20, int(1.2 * est))

    kernel = functools.partial(
        _layernorm_kernel,
        eps=float(eps),
        inv_n=1.0 / F,
        inv_nm1=1.0 / (F - 1) if F > 1 else 1.0,   # F==1: torch would 0/0->nan
        n_over_nm1=F / (F - 1) if F > 1 else 1.0,
    )

    out_flat = pl.pallas_call(
        kernel,
        out_shape=jax.ShapeDtypeStruct((N, F), x.dtype),
        grid_spec=pltpu.PrefetchScalarGridSpec(
            num_scalar_prefetch=0,
            grid=grid,
            in_specs=[
                pl.BlockSpec((tn, F), lambda i: (i, 0)),
                pl.BlockSpec((1, F), lambda i: (0, 0)),  # constant -> resident
                pl.BlockSpec((1, F), lambda i: (0, 0)),
            ],
            out_specs=pl.BlockSpec((tn, F), lambda i: (i, 0)),
        ),
        compiler_params=pltpu.CompilerParams(
            dimension_semantics=("parallel",),  # rows independent; 2 TCs on v7x
            vmem_limit_bytes=vmem_limit,
        ),
    )(x_flat, g_flat, b_flat)

    return out_flat.reshape(N, C, H, W)


def _reference(x, gamma, beta, eps=1e-5):
    # Pure-JAX mirror of the PyTorch forward (two-pass, unbiased std,
    # eps added to std).  The batch==1 path is identical in this layout.
    N = x.shape[0]
    xf = x.reshape(N, -1).astype(jnp.float32)
    mean = xf.mean(axis=1)
    std = jnp.sqrt(jnp.sum((xf - mean[:, None]) ** 2, axis=1) / (xf.shape[1] - 1))
    shape = (N, 1, 1, 1)
    y = (x - mean.reshape(shape)) / (std.reshape(shape) + eps)
    return y * gamma.reshape(1, -1, 1, 1) + beta.reshape(1, -1, 1, 1)


if __name__ == "__main__":
    key = jax.random.PRNGKey(0)
    kx, kg = jax.random.split(key)

    N, C, H, W = 2, 4, 16, 16
    x = jax.random.normal(kx, (N, C, H, W), dtype=jnp.float32)
    # nn.Parameter(torch.Tensor(C).uniform_()) -> uniform init; beta zeros.
    gamma = jax.random.uniform(kg, (C,), dtype=jnp.float32)
    beta = jnp.zeros((C,), dtype=jnp.float32)

    g_flat, b_flat = flatten_affine(gamma, beta, H * W)  # once, off the hot path
    out = layer_norm(x, g_flat, b_flat)
    out = jax.block_until_ready(out)

    ref = _reference(x, gamma, beta)
    assert out.shape == (N, C, H, W)
    assert jnp.allclose(out, ref, atol=1e-5, rtol=1e-5), "mismatch vs reference"

    print("KERNEL_OK")
</pallas_src>

<mosaic_0001>
module attributes {stable_mosaic.version = 11 : i64} {
  func.func @_layernorm_kernel(%arg0: i32, %arg1: memref<2x1024xf32, #tpu.memory_space<vmem>>, %arg2: memref<1x1024xf32, #tpu.memory_space<vmem>>, %arg3: memref<1x1024xf32, #tpu.memory_space<vmem>>, %arg4: memref<2x1024xf32, #tpu.memory_space<vmem>>) attributes {dimension_semantics = [#tpu.dimension_semantics<parallel>], iteration_bounds = array<i64: 1>, scalar_prefetch = 0 : i64, scratch_operands = 0 : i64, tpu.core_type = #tpu.core_type<tc>, window_params = [{transform_indices = @transform_0, window_bounds = array<i64: 2, 1024>}, {pipeline_mode = #tpu.pipeline_mode<synchronous>, transform_indices = @transform_1, window_bounds = array<i64: 1, 1024>}, {pipeline_mode = #tpu.pipeline_mode<synchronous>, transform_indices = @transform_2, window_bounds = array<i64: 1, 1024>}, {transform_indices = @transform_3, window_bounds = array<i64: 2, 1024>}]} {
    %c0 = arith.constant 0 : index
    %c0_0 = arith.constant 0 : index
    %0 = vector.load %arg1[%c0, %c0_0] : memref<2x1024xf32, #tpu.memory_space<vmem>>, vector<2x1024xf32>
    %cst = arith.constant dense<0.000000e+00> : vector<2xf32>
    %1 = vector.multi_reduction <add>, %0, %cst [1] : vector<2x1024xf32> to vector<2xf32>
    %2 = vector.shape_cast %1 : vector<2xf32> to vector<2x1xf32>
    %3 = arith.mulf %0, %0 : vector<2x1024xf32>
    %cst_1 = arith.constant dense<0.000000e+00> : vector<2xf32>
    %4 = vector.multi_reduction <add>, %3, %cst_1 [1] : vector<2x1024xf32> to vector<2xf32>
    %5 = vector.shape_cast %4 : vector<2xf32> to vector<2x1xf32>
    %cst_2 = arith.constant 9.765625E-4 : f32
    %6 = vector.broadcast %cst_2 : f32 to vector<2x1xf32>
    %7 = arith.mulf %2, %6 : vector<2x1xf32>
    %cst_3 = arith.constant 9.77517105E-4 : f32
    %8 = vector.broadcast %cst_3 : f32 to vector<2x1xf32>
    %9 = arith.mulf %5, %8 : vector<2x1xf32>
    %10 = arith.mulf %7, %7 : vector<2x1xf32>
    %cst_4 = arith.constant 1.00097752 : f32
    %11 = vector.broadcast %cst_4 : f32 to vector<2x1xf32>
    %12 = arith.mulf %11, %10 : vector<2x1xf32>
    %13 = arith.subf %9, %12 : vector<2x1xf32>
    %cst_5 = arith.constant 0.000000e+00 : f32
    %14 = vector.broadcast %cst_5 : f32 to vector<2x1xf32>
    %15 = arith.maximumf %13, %14 : vector<2x1xf32>
    %16 = math.sqrt %15 : vector<2x1xf32>
    %cst_6 = arith.constant 9.99999974E-6 : f32
    %17 = vector.broadcast %cst_6 : f32 to vector<2x1xf32>
    %18 = arith.addf %16, %17 : vector<2x1xf32>
    %19 = tpu.reciprocal %18 : vector<2x1xf32> -> vector<2x1xf32>
    %20 = vector.broadcast %7 : vector<2x1xf32> to vector<2x1024xf32>
    %21 = arith.subf %0, %20 : vector<2x1024xf32>
    %22 = vector.broadcast %19 : vector<2x1xf32> to vector<2x1024xf32>
    %23 = arith.mulf %21, %22 : vector<2x1024xf32>
    %c0_7 = arith.constant 0 : index
    %c0_8 = arith.constant 0 : index
    %24 = vector.load %arg2[%c0_7, %c0_8] : memref<1x1024xf32, #tpu.memory_space<vmem>>, vector<1x1024xf32>
    %25 = vector.broadcast %24 : vector<1x1024xf32> to vector<2x1024xf32>
    %26 = arith.mulf %23, %25 : vector<2x1024xf32>
    %c0_9 = arith.constant 0 : index
    %c0_10 = arith.constant 0 : index
    %27 = vector.load %arg3[%c0_9, %c0_10] : memref<1x1024xf32, #tpu.memory_space<vmem>>, vector<1x1024xf32>
    %28 = vector.broadcast %27 : vector<1x1024xf32> to vector<2x1024xf32>
    %29 = arith.addf %26, %28 : vector<2x1024xf32>
    %c0_11 = arith.constant 0 : index
    %c0_12 = arith.constant 0 : index
    %30 = vector.load %arg4[%c0_11, %c0_12] : memref<2x1024xf32, #tpu.memory_space<vmem>>, vector<2x1024xf32>
    tpu.vector_store %arg4[%c0_11, %c0_12], %29 {strides = array<i32>} : memref<2x1024xf32, #tpu.memory_space<vmem>>, vector<2x1024xf32>,
    return
  }
  func.func @transform_0(%arg0: i32) -> (i32, i32) {
    %c0_i32 = arith.constant 0 : i32
    %c0_i32_0 = arith.constant 0 : i32
    return %arg0, %c0_i32 : i32, i32
  }
  func.func @transform_1(%arg0: i32) -> (i32, i32) {
    %c0_i32 = arith.constant 0 : i32
    %c0_i32_0 = arith.constant 0 : i32
    %c0_i32_1 = arith.constant 0 : i32
    return %c0_i32, %c0_i32_0 : i32, i32
  }
  func.func @transform_2(%arg0: i32) -> (i32, i32) {
    %c0_i32 = arith.constant 0 : i32
    %c0_i32_0 = arith.constant 0 : i32
    %c0_i32_1 = arith.constant 0 : i32
    return %c0_i32, %c0_i32_0 : i32, i32
  }
  func.func @transform_3(%arg0: i32) -> (i32, i32) {
    %c0_i32 = arith.constant 0 : i32
    %c0_i32_0 = arith.constant 0 : i32
    return %arg0, %c0_i32 : i32, i32
  }
}

</mosaic_0001>

<llo_original>
// kernel: layer_norm.1
$region0: #{layer_norm.1}
  #allocation0 [shape = 'u32[]', space=smem, size = 0x4, offset = 0x4, fixed_abs, tag = 'smem constant byte address 0x4 - core index']
  #allocation1 [shape = 'u32[144,128]{1,0:T(1,128)}', space=vmem, size = 0x12000, scoped, tag = 'internal scratch']
  %s0 = inlined_call_operand.vmem [shape: f32[2,1024], index: 0, kind: input, shape index: {}]
  %s1 = inlined_call_operand.vmem [shape: f32[1,1024], index: 1, kind: input, shape index: {}]
  %s2 = inlined_call_operand.vmem [shape: f32[1,1024], index: 2, kind: input, shape index: {}]
  %s3 = inlined_call_operand.vmem [shape: f32[2,1024], index: 3, kind: output, shape index: {}]
  %s4 = sld [smem:[#allocation0]]
  $region22: #{layer_norm.1} parent=0
    _
  %s6 = ssub.s32 1, %s4
  %s7 = scalar_select 0, %s6, %s4
  // Predicated region
  $region2: #{layer_norm.1} parent=0 // pred_check
    _
  $region3: #{layer_norm.1} parent=0 // pred_check_branch
    %9 = sbr.rel (0) target = $region5
  $region4: #{layer_norm.1} parent=0 // pred_region
    _
  $region5: #{layer_norm.1} parent=0 // pred_fallthru
    _
  // Predicated region
  $region6: #{layer_norm.1} parent=0 // pred_check
    _
  $region7: #{layer_norm.1} parent=0 // pred_check_branch
    %11 = sbr.rel (0) target = $region9
  $region8: #{layer_norm.1} parent=0 // pred_region
    _
  $region9: #{layer_norm.1} parent=0 // pred_fallthru
    _
  // Predicated region
  $region10: #{layer_norm.1} parent=0 // pred_check
    _
  $region11: #{layer_norm.1} parent=0 // pred_check_branch
    %13 = sbr.rel (0) target = $region13
  $region12: #{layer_norm.1} parent=0 // pred_region
    _
  $region13: #{layer_norm.1} parent=0 // pred_fallthru
    _
  %v14 = vld [vmem:[%s0] sm:$0xff]
  %v15 = vld [vmem:[%s0 + $0x8] sm:$0xff]
  %v18 = vcombine.high %v14, %v14
  %v20 = vunpack.c.l.s4 1983009808
  %v21 = vunpack.c.0.s8 %v20
  %v22 = vlaneseq
  %v23 = vshrl.u32 %v22, 7
  %v24 = vsub.s32 %v21, %v23
  %v25 = vrot.slane %v14, %v24
  %v27 = vunpack.c.l.s4 1983009808
  %v28 = vunpack.c.0.s8 %v27
  %v29 = vlaneseq
  %v30 = vshrl.u32 %v29, 7
  %v31 = vsub.s32 %v28, %v30
  %v32 = vrot.slane %v18, %v31
  %v33 = vcombine.high %v25, %v25
  %v34 = vcombine.high %v32, %v32
  %v35 = vcombine.high %v15, %v15
  %v37 = vunpack.c.l.s4 1983009808
  %v38 = vunpack.c.0.s8 %v37
  %v39 = vlaneseq
  %v40 = vshrl.u32 %v39, 7
  %v41 = vsub.s32 %v38, %v40
  %v42 = vrot.slane %v15, %v41
  %v44 = vunpack.c.l.s4 1983009808
  %v45 = vunpack.c.0.s8 %v44
  %v46 = vlaneseq
  %v47 = vshrl.u32 %v46, 7
  %v48 = vsub.s32 %v45, %v47
  %v49 = vrot.slane %v35, %v48
  %v50 = vcombine.high %v42, %v42
  %v51 = vcombine.high %v49, %v49
  %vm60 = vcmask 1041408
  %v61 = vsel %vm60, %v25, 0.0
  %v62 = vsel %vm60, %v33, 0.0
  %v63 = vadd.f32 %v61, %v62
  %v64 = vsel %vm60, %v32, 0.0
  %v65 = vadd.f32 %v63, %v64
  %v66 = vsel %vm60, %v34, 0.0
  %v67 = vadd.f32 %v65, %v66
  %v68 = vsel %vm60, %v42, 0.0
  %v69 = vadd.f32 %v67, %v68
  %v70 = vsel %vm60, %v50, 0.0
  %v71 = vadd.f32 %v69, %v70
  %v72 = vsel %vm60, %v49, 0.0
  %v73 = vadd.f32 %v71, %v72
  %v74 = vsel %vm60, %v51, 0.0
  %v75 = vadd.f32 %v73, %v74
  %76 = vadd.xlane.f32.xlu0 %v75
  %v77 = vpop.xlane.xlu0 %76
  %v78 = vmul.f32 %v14, %v14
  %v79 = vmul.f32 %v15, %v15
  %v82 = vcombine.high %v78, %v78
  %v84 = vunpack.c.l.s4 1983009808
  %v85 = vunpack.c.0.s8 %v84
  %v86 = vlaneseq
  %v87 = vshrl.u32 %v86, 7
  %v88 = vsub.s32 %v85, %v87
  %v89 = vrot.slane %v78, %v88
  %v91 = vunpack.c.l.s4 1983009808
  %v92 = vunpack.c.0.s8 %v91
  %v93 = vlaneseq
  %v94 = vshrl.u32 %v93, 7
  %v95 = vsub.s32 %v92, %v94
  %v96 = vrot.slane %v82, %v95
  %v97 = vcombine.high %v89, %v89
  %v98 = vcombine.high %v96, %v96
  %v99 = vcombine.high %v79, %v79
  %v101 = vunpack.c.l.s4 1983009808
  %v102 = vunpack.c.0.s8 %v101
  %v103 = vlaneseq
  %v104 = vshrl.u32 %v103, 7
  %v105 = vsub.s32 %v102, %v104
  %v106 = vrot.slane %v79, %v105
  %v108 = vunpack.c.l.s4 1983009808
  %v109 = vunpack.c.0.s8 %v108
  %v110 = vlaneseq
  %v111 = vshrl.u32 %v110, 7
  %v112 = vsub.s32 %v109, %v111
  %v113 = vrot.slane %v99, %v112
  %v114 = vcombine.high %v106, %v106
  %v115 = vcombine.high %v113, %v113
  %v124 = vsel %vm60, %v89, 0.0
  %v125 = vsel %vm60, %v97, 0.0
  %v126 = vadd.f32 %v124, %v125
  %v127 = vsel %vm60, %v96, 0.0
  %v128 = vadd.f32 %v126, %v127
  %v129 = vsel %vm60, %v98, 0.0
  %v130 = vadd.f32 %v128, %v129
  %v131 = vsel %vm60, %v106, 0.0
  %v132 = vadd.f32 %v130, %v131
  %v133 = vsel %vm60, %v114, 0.0
  %v134 = vadd.f32 %v132, %v133
  %v135 = vsel %vm60, %v113, 0.0
  %v136 = vadd.f32 %v134, %v135
  %v137 = vsel %vm60, %v115, 0.0
  %v138 = vadd.f32 %v136, %v137
  %139 = vadd.xlane.f32.xlu0 %v138
  %v140 = vpop.xlane.xlu0 %139
  %v141 = vmul.f32 %v77, 0.0009765625
  %v142 = vmul.f32 %v140, 0.0009775171
  %v143 = vmul.f32 %v141, %v141
  %v144 = vmul.f32 %v143, 1.0009775
  %v145 = vsub.f32 %v142, %v144
  %v146 = vmax.f32 %v145, 0.0
  %v147 = vrsqrt.pop %v146
  %v148 = vmul.f32 %v146, %v147
  %vm149 = vcmp.eq.f32.partialorder %v146, inf
  %v150 = vsel %vm149, %v146, %v148
  %vm151 = vcmp.eq.f32.partialorder %v146, 0.0
  %v152 = vand.u32 %v146, 2147483648
  %v153 = vsel %vm151, %v152, %v150
  %v154 = vadd.f32 %v153, 1e-05
  %v155 = vrcp.pop %v154
  %v158 = vunpack.c.l.s4 269488144
  %v159 = vunpack.c.0.s8 %v158
  %v160 = vlaneseq
  %v161 = vshrl.u32 %v160, 7
  %v162 = vsub.s32 %v159, %v161
  %v163 = vrot.slane %v141, %v162
  %v165 = vsub.f32 %v14, %v163
  %v166 = vsub.f32 %v15, %v163
  %v169 = vunpack.c.l.s4 269488144
  %v170 = vunpack.c.0.s8 %v169
  %v171 = vlaneseq
  %v172 = vshrl.u32 %v171, 7
  %v173 = vsub.s32 %v170, %v172
  %v174 = vrot.slane %v155, %v173
  %v176 = vmul.f32 %v165, %v174
  %v177 = vmul.f32 %v166, %v174
  %v178 = vld [vmem:[%s1] sm:$0xff]
  %v180 = vlaneseq
  %v181 = vshrl.u32 %v180, 7
  %v182 = vsub.s32 0, %v181
  %v183 = vrot.slane %v178, %v182
  %v184 = vlaneseq
  %v185 = vshrl.u32 %v184, 7
  %v186 = vsub.s32 1, %v185
  %v187 = vrot.slane %v178, %v186
  %v188 = vlaneseq
  %v189 = vshrl.u32 %v188, 7
  %v190 = vsub.s32 2, %v189
  %v191 = vrot.slane %v178, %v190
  %v192 = vlaneseq
  %v193 = vshrl.u32 %v192, 7
  %v194 = vsub.s32 3, %v193
  %v195 = vrot.slane %v178, %v194
  %v196 = vlaneseq
  %v197 = vshrl.u32 %v196, 7
  %v198 = vsub.s32 4, %v197
  %v199 = vrot.slane %v178, %v198
  %v200 = vlaneseq
  %v201 = vshrl.u32 %v200, 7
  %v202 = vsub.s32 5, %v201
  %v203 = vrot.slane %v178, %v202
  %v204 = vlaneseq
  %v205 = vshrl.u32 %v204, 7
  %v206 = vsub.s32 6, %v205
  %v207 = vrot.slane %v178, %v206
  %v208 = vlaneseq
  %v209 = vshrl.u32 %v208, 7
  %v210 = vsub.s32 7, %v209
  %v211 = vrot.slane %v178, %v210
  %v212 = vcombine.low %v183, %v187
  %v213 = vcombine.low %v191, %v195
  %v215 = vunpack.c.l.s4 1983009808
  %v216 = vunpack.c.0.s8 %v215
  %v217 = vlaneseq
  %v218 = vshrl.u32 %v217, 7
  %v219 = vsub.s32 %v216, %v218
  %v220 = vrot.slane %v212, %v219
  %v222 = vunpack.c.l.s4 1983009808
  %v223 = vunpack.c.0.s8 %v222
  %v224 = vlaneseq
  %v225 = vshrl.u32 %v224, 7
  %v226 = vsub.s32 %v223, %v225
  %v227 = vrot.slane %v213, %v226
  %v228 = vcombine.low %v220, %v227
  %v229 = vcombine.low %v199, %v203
  %v230 = vcombine.low %v207, %v211
  %v232 = vunpack.c.l.s4 1983009808
  %v233 = vunpack.c.0.s8 %v232
  %v234 = vlaneseq
  %v235 = vshrl.u32 %v234, 7
  %v236 = vsub.s32 %v233, %v235
  %v237 = vrot.slane %v229, %v236
  %v239 = vunpack.c.l.s4 1983009808
  %v240 = vunpack.c.0.s8 %v239
  %v241 = vlaneseq
  %v242 = vshrl.u32 %v241, 7
  %v243 = vsub.s32 %v240, %v242
  %v244 = vrot.slane %v230, %v243
  %v245 = vcombine.low %v237, %v244
  %v248 = vmul.f32 %v176, %v228
  %v249 = vmul.f32 %v177, %v245
  %v250 = vld [vmem:[%s2] sm:$0xff]
  %v252 = vlaneseq
  %v253 = vshrl.u32 %v252, 7
  %v254 = vsub.s32 0, %v253
  %v255 = vrot.slane %v250, %v254
  %v256 = vlaneseq
  %v257 = vshrl.u32 %v256, 7
  %v258 = vsub.s32 1, %v257
  %v259 = vrot.slane %v250, %v258
  %v260 = vlaneseq
  %v261 = vshrl.u32 %v260, 7
  %v262 = vsub.s32 2, %v261
  %v263 = vrot.slane %v250, %v262
  %v264 = vlaneseq
  %v265 = vshrl.u32 %v264, 7
  %v266 = vsub.s32 3, %v265
  %v267 = vrot.slane %v250, %v266
  %v268 = vlaneseq
  %v269 = vshrl.u32 %v268, 7
  %v270 = vsub.s32 4, %v269
  %v271 = vrot.slane %v250, %v270
  %v272 = vlaneseq
  %v273 = vshrl.u32 %v272, 7
  %v274 = vsub.s32 5, %v273
  %v275 = vrot.slane %v250, %v274
  %v276 = vlaneseq
  %v277 = vshrl.u32 %v276, 7
  %v278 = vsub.s32 6, %v277
  %v279 = vrot.slane %v250, %v278
  %v280 = vlaneseq
  %v281 = vshrl.u32 %v280, 7
  %v282 = vsub.s32 7, %v281
  %v283 = vrot.slane %v250, %v282
  %v284 = vcombine.low %v255, %v259
  %v285 = vcombine.low %v263, %v267
  %v287 = vunpack.c.l.s4 1983009808
  %v288 = vunpack.c.0.s8 %v287
  %v289 = vlaneseq
  %v290 = vshrl.u32 %v289, 7
  %v291 = vsub.s32 %v288, %v290
  %v292 = vrot.slane %v284, %v291
  %v294 = vunpack.c.l.s4 1983009808
  %v295 = vunpack.c.0.s8 %v294
  %v296 = vlaneseq
  %v297 = vshrl.u32 %v296, 7
  %v298 = vsub.s32 %v295, %v297
  %v299 = vrot.slane %v285, %v298
  %v300 = vcombine.low %v292, %v299
  %v301 = vcombine.low %v271, %v275
  %v302 = vcombine.low %v279, %v283
  %v304 = vunpack.c.l.s4 1983009808
  %v305 = vunpack.c.0.s8 %v304
  %v306 = vlaneseq
  %v307 = vshrl.u32 %v306, 7
  %v308 = vsub.s32 %v305, %v307
  %v309 = vrot.slane %v301, %v308
  %v311 = vunpack.c.l.s4 1983009808
  %v312 = vunpack.c.0.s8 %v311
  %v313 = vlaneseq
  %v314 = vshrl.u32 %v313, 7
  %v315 = vsub.s32 %v312, %v314
  %v316 = vrot.slane %v302, %v315
  %v317 = vcombine.low %v309, %v316
  %v320 = vadd.f32 %v248, %v300
  %v321 = vadd.f32 %v249, %v317
  %322 = vst [vmem:[%s3] sm:$0xff] %v320
  %323 = vst [vmem:[%s3 + $0x8] sm:$0xff] %v321
  // Predicated region
  $region14: #{layer_norm.1} parent=0 // pred_check
    _
  $region15: #{layer_norm.1} parent=0 // pred_check_branch
    %325 = sbr.rel (0) target = $region17
  $region16: #{layer_norm.1} parent=0 // pred_region
    _
  $region17: #{layer_norm.1} parent=0 // pred_fallthru
    _
  // Predicated region
  $region18: #{layer_norm.1} parent=0 // pred_check
    _
  $region19: #{layer_norm.1} parent=0 // pred_check_branch
    %327 = sbr.rel (0) target = $region21
  $region20: #{layer_norm.1} parent=0 // pred_region
    _
  $region21: #{layer_norm.1} parent=0 // pred_fallthru
    _

</llo_original>
